<compile_context>
chip_gen: v5e
topology: v5e:2x2
jax: 0.10.0
libtpu: 0.0.40
codegen_flags: <defaults>
</compile_context>

<pallas_src>
import jax
import jax.numpy as jnp
from jax.experimental import pallas as pl
from jax.experimental.pallas import tpu as pltpu


def fc_ngram_kernel(x_ref, w0_ref, b0_ref, w1_ref, aff_ref, o_ref):
    # Linear 0 + ReLU (f32 MXU accumulation).
    h = jnp.dot(x_ref[...], w0_ref[...], preferred_element_type=jnp.float32)
    h = jnp.maximum(h + b0_ref[...], 0.0)

    # Linear 1 + ReLU.  aff_ref rows: 0 = b1, 1 = BN scale, 2 = BN shift.
    z = jnp.dot(h, w1_ref[...], preferred_element_type=jnp.float32)
    z = jnp.maximum(z + aff_ref[0:1, :], 0.0)

    # Eval-mode BatchNorm1d as a per-feature affine, applied AFTER the ReLU
    # (cannot be folded into w1/b1 because ReLU intervenes).
    # F.dropout(p=0.5, training=False) -> identity.
    o_ref[...] = (z * aff_ref[1:2, :] + aff_ref[2:3, :]).astype(o_ref.dtype)


def _round_up(n, m):
    return ((n + m - 1) // m) * m


def _default_num_steps():
    # 2 TensorCores on v7x -> 2 balanced tiles; single-TC chips -> 1 grid step.
    try:
        kind = jax.devices()[0].device_kind.lower()
        if "v7" in kind:
            return 2
    except Exception:
        pass
    return 1


def fc_ngram_forward(x, w0, b0, w1, b1, gamma, beta, rmean, rvar,
                     *, num_steps=None, eps=1e-5):
    B, in_feat = x.shape
    h0 = w0.shape[1]
    n_out = w1.shape[1]
    f32 = jnp.float32

    # --- Eval-mode BN -> per-feature affine (exact; applied post-ReLU in the kernel). ---
    inv = jax.lax.rsqrt(rvar.astype(f32) + eps)
    bn_scale = gamma.astype(f32) * inv
    bn_shift = beta.astype(f32) - rmean.astype(f32) * gamma.astype(f32) * inv
    # Stack b1 / scale / shift into one small resident (3, n_out) input.
    aff = jnp.stack([b1.astype(f32), bn_scale, bn_shift], axis=0)

    b0f = b0.astype(f32).reshape(1, -1)
    w0f = w0.astype(f32)
    w1f = w1.astype(f32)
    xf = x.astype(f32)

    # --- Batch tiling: pick steps first, then the smallest 8-aligned tile covering B. ---
    n_steps = _default_num_steps() if num_steps is None else max(int(num_steps), 1)
    tb = _round_up(pl.cdiv(B, n_steps), 8)
    b_pad = tb * n_steps
    if b_pad != B:
        xf = jnp.pad(xf, ((0, b_pad - B), (0, 0)))
    grid = (n_steps,)

    cost = pl.CostEstimate(
        flops=2 * b_pad * (in_feat * h0 + h0 * n_out),
        transcendentals=0,
        bytes_accessed=4 * (xf.size + b_pad * n_out
                            + w0f.size + w1f.size + b0f.size + aff.size),
    )

    out = pl.pallas_call(
        fc_ngram_kernel,
        out_shape=jax.ShapeDtypeStruct((b_pad, n_out), f32),
        grid=grid,
        in_specs=[
            pl.BlockSpec((tb, in_feat), lambda i: (i, 0)),   # x tile (streamed)
            pl.BlockSpec((in_feat, h0), lambda i: (0, 0)),   # w0 (VMEM-resident)
            pl.BlockSpec((1, h0), lambda i: (0, 0)),         # b0
            pl.BlockSpec((h0, n_out), lambda i: (0, 0)),     # w1 (VMEM-resident)
            pl.BlockSpec((3, n_out), lambda i: (0, 0)),      # [b1; BN scale; BN shift]
        ],
        out_specs=pl.BlockSpec((tb, n_out), lambda i: (i, 0)),
        compiler_params=pltpu.CompilerParams(
            dimension_semantics=("arbitrary",) if n_steps == 1 else ("parallel",)),
        cost_estimate=cost,
    )(xf, w0f, b0f, w1f, aff)

    if b_pad != B:
        out = out[:B]
    return out


def reference_forward(x, w0, b0, w1, b1, gamma, beta, rmean, rvar):
    h = jnp.maximum(x @ w0 + b0, 0.0)
    h = jnp.maximum(h @ w1 + b1, 0.0)
    return (h - rmean) * jax.lax.rsqrt(rvar + 1e-5) * gamma + beta


if __name__ == "__main__":
    # Shapes consistent with the module:
    #   input_size=32, hidden_size_list=[64, 16], output_size=16 (== last hidden, required by BN)
    batch, input_size = 600, 32
    hidden_size_list = [64, 16]
    output_size = 16

    key = jax.random.PRNGKey(0)
    k_x, k_w0, k_b0, k_w1, k_b1, k_g, k_be, k_m, k_v = jax.random.split(key, 9)

    x = jax.random.normal(k_x, (batch, input_size), dtype=jnp.float32)

    # Linear weights stored as (in_features, out_features) = transpose of nn.Linear.weight.
    w0 = jax.random.normal(k_w0, (input_size, hidden_size_list[0]), dtype=jnp.float32) * 0.1
    b0 = jax.random.normal(k_b0, (hidden_size_list[0],), dtype=jnp.float32) * 0.1
    w1 = jax.random.normal(k_w1, (hidden_size_list[0], hidden_size_list[1]), dtype=jnp.float32) * 0.1
    b1 = jax.random.normal(k_b1, (hidden_size_list[1],), dtype=jnp.float32) * 0.1

    # Non-trivial BatchNorm1d parameters / running stats (as after training) to exercise
    # the eval-mode affine path.
    gamma = 1.0 + 0.1 * jax.random.normal(k_g, (output_size,), dtype=jnp.float32)
    beta = 0.1 * jax.random.normal(k_be, (output_size,), dtype=jnp.float32)
    rmean = 0.1 * jax.random.normal(k_m, (output_size,), dtype=jnp.float32)
    rvar = jnp.abs(1.0 + 0.1 * jax.random.normal(k_v, (output_size,), dtype=jnp.float32))

    out = fc_ngram_forward(x, w0, b0, w1, b1, gamma, beta, rmean, rvar)
    out = jax.block_until_ready(out)

    ref = reference_forward(x, w0, b0, w1, b1, gamma, beta, rmean, rvar)
    assert out.shape == (batch, output_size)
    # Tolerance covers possible bf16-pass decomposition of the f32 MXU matmuls.
    assert jnp.allclose(out, ref, atol=2e-2, rtol=2e-2), "mismatch vs reference"

    print("KERNEL_OK")
</pallas_src>

<mosaic_0001>
module attributes {stable_mosaic.version = 11 : i64} {
  func.func @fc_ngram_kernel(%arg0: i32, %arg1: memref<600x32xf32, #tpu.memory_space<vmem>>, %arg2: memref<32x64xf32, #tpu.memory_space<vmem>>, %arg3: memref<1x64xf32, #tpu.memory_space<vmem>>, %arg4: memref<64x16xf32, #tpu.memory_space<vmem>>, %arg5: memref<3x16xf32, #tpu.memory_space<vmem>>, %arg6: memref<600x16xf32, #tpu.memory_space<vmem>>) attributes {dimension_semantics = [#tpu.dimension_semantics<arbitrary>], iteration_bounds = array<i64: 1>, scalar_prefetch = 0 : i64, scratch_operands = 0 : i64, tpu.core_type = #tpu.core_type<tc>, window_params = [{transform_indices = @transform_0, window_bounds = array<i64: 600, 32>}, {pipeline_mode = #tpu.pipeline_mode<synchronous>, transform_indices = @transform_1, window_bounds = array<i64: 32, 64>}, {pipeline_mode = #tpu.pipeline_mode<synchronous>, transform_indices = @transform_2, window_bounds = array<i64: 1, 64>}, {pipeline_mode = #tpu.pipeline_mode<synchronous>, transform_indices = @transform_3, window_bounds = array<i64: 64, 16>}, {pipeline_mode = #tpu.pipeline_mode<synchronous>, transform_indices = @transform_4, window_bounds = array<i64: 3, 16>}, {transform_indices = @transform_5, window_bounds = array<i64: 600, 16>}]} {
    %c0 = arith.constant 0 : index
    %c0_0 = arith.constant 0 : index
    %0 = vector.load %arg1[%c0, %c0_0] : memref<600x32xf32, #tpu.memory_space<vmem>>, vector<600x32xf32>
    %c0_1 = arith.constant 0 : index
    %c0_2 = arith.constant 0 : index
    %1 = vector.load %arg2[%c0_1, %c0_2] : memref<32x64xf32, #tpu.memory_space<vmem>>, vector<32x64xf32>
    %cst = arith.constant dense<0.000000e+00> : vector<600x64xf32>
    %2 = tpu.matmul %0, %1, %cst {dimension_numbers = #tpu.dot_dimension_numbers<[1], [0], [0], [1], [0, 0, 1, 1], [], []>} : vector<600x32xf32>, vector<32x64xf32>, vector<600x64xf32> -> vector<600x64xf32>
    %c0_3 = arith.constant 0 : index
    %c0_4 = arith.constant 0 : index
    %3 = vector.load %arg3[%c0_3, %c0_4] : memref<1x64xf32, #tpu.memory_space<vmem>>, vector<1x64xf32>
    %4 = vector.broadcast %3 : vector<1x64xf32> to vector<600x64xf32>
    %5 = arith.addf %2, %4 : vector<600x64xf32>
    %cst_5 = arith.constant 0.000000e+00 : f32
    %6 = vector.broadcast %cst_5 : f32 to vector<600x64xf32>
    %7 = arith.maximumf %5, %6 : vector<600x64xf32>
    %c0_6 = arith.constant 0 : index
    %c0_7 = arith.constant 0 : index
    %8 = vector.load %arg4[%c0_6, %c0_7] : memref<64x16xf32, #tpu.memory_space<vmem>>, vector<64x16xf32>
    %cst_8 = arith.constant dense<0.000000e+00> : vector<600x16xf32>
    %9 = tpu.matmul %7, %8, %cst_8 {dimension_numbers = #tpu.dot_dimension_numbers<[1], [0], [0], [1], [0, 0, 1, 1], [], []>} : vector<600x64xf32>, vector<64x16xf32>, vector<600x16xf32> -> vector<600x16xf32>
    %c0_9 = arith.constant 0 : index
    %c0_10 = arith.constant 0 : index
    %10 = vector.load %arg5[%c0_9, %c0_10] : memref<3x16xf32, #tpu.memory_space<vmem>>, vector<1x16xf32>
    %11 = vector.broadcast %10 : vector<1x16xf32> to vector<600x16xf32>
    %12 = arith.addf %9, %11 : vector<600x16xf32>
    %cst_11 = arith.constant 0.000000e+00 : f32
    %13 = vector.broadcast %cst_11 : f32 to vector<600x16xf32>
    %14 = arith.maximumf %12, %13 : vector<600x16xf32>
    %c1 = arith.constant 1 : index
    %c0_12 = arith.constant 0 : index
    %15 = vector.load %arg5[%c1, %c0_12] : memref<3x16xf32, #tpu.memory_space<vmem>>, vector<1x16xf32>
    %16 = vector.broadcast %15 : vector<1x16xf32> to vector<600x16xf32>
    %17 = arith.mulf %14, %16 : vector<600x16xf32>
    %c2 = arith.constant 2 : index
    %c0_13 = arith.constant 0 : index
    %18 = vector.load %arg5[%c2, %c0_13] : memref<3x16xf32, #tpu.memory_space<vmem>>, vector<1x16xf32>
    %19 = vector.broadcast %18 : vector<1x16xf32> to vector<600x16xf32>
    %20 = arith.addf %17, %19 : vector<600x16xf32>
    %c0_14 = arith.constant 0 : index
    %c0_15 = arith.constant 0 : index
    %21 = vector.load %arg6[%c0_14, %c0_15] : memref<600x16xf32, #tpu.memory_space<vmem>>, vector<600x16xf32>
    tpu.vector_store %arg6[%c0_14, %c0_15], %20 {strides = array<i32>} : memref<600x16xf32, #tpu.memory_space<vmem>>, vector<600x16xf32>,
    return
  }
  func.func @transform_0(%arg0: i32) -> (i32, i32) {
    %c0_i32 = arith.constant 0 : i32
    %c0_i32_0 = arith.constant 0 : i32
    return %arg0, %c0_i32 : i32, i32
  }
  func.func @transform_1(%arg0: i32) -> (i32, i32) {
    %c0_i32 = arith.constant 0 : i32
    %c0_i32_0 = arith.constant 0 : i32
    %c0_i32_1 = arith.constant 0 : i32
    return %c0_i32, %c0_i32_0 : i32, i32
  }
  func.func @transform_2(%arg0: i32) -> (i32, i32) {
    %c0_i32 = arith.constant 0 : i32
    %c0_i32_0 = arith.constant 0 : i32
    %c0_i32_1 = arith.constant 0 : i32
    return %c0_i32, %c0_i32_0 : i32, i32
  }
  func.func @transform_3(%arg0: i32) -> (i32, i32) {
    %c0_i32 = arith.constant 0 : i32
    %c0_i32_0 = arith.constant 0 : i32
    %c0_i32_1 = arith.constant 0 : i32
    return %c0_i32, %c0_i32_0 : i32, i32
  }
  func.func @transform_4(%arg0: i32) -> (i32, i32) {
    %c0_i32 = arith.constant 0 : i32
    %c0_i32_0 = arith.constant 0 : i32
    %c0_i32_1 = arith.constant 0 : i32
    return %c0_i32, %c0_i32_0 : i32, i32
  }
  func.func @transform_5(%arg0: i32) -> (i32, i32) {
    %c0_i32 = arith.constant 0 : i32
    %c0_i32_0 = arith.constant 0 : i32
    return %arg0, %c0_i32 : i32, i32
  }
}

</mosaic_0001>

<llo_original>
// kernel: tpu_custom_call.1
$region0: #{tpu_custom_call.1}
  #allocation0 [shape = 'u32[]', space=smem, size = 0x4, offset = 0x4, fixed_abs, tag = 'smem constant byte address 0x4 - core index']
  #allocation1 [shape = 'u32[72,128]{1,0:T(1,128)}', space=vmem, size = 0x9000, scoped, tag = 'internal scratch']
  %s0 = inlined_call_operand.vmem [shape: f32[600,32], index: 0, kind: input, shape index: {}]
  %s1 = inlined_call_operand.vmem [shape: f32[32,64], index: 1, kind: input, shape index: {}]
  %s2 = inlined_call_operand.vmem [shape: f32[1,64], index: 2, kind: input, shape index: {}]
  %s3 = inlined_call_operand.vmem [shape: f32[64,16], index: 3, kind: input, shape index: {}]
  %s4 = inlined_call_operand.vmem [shape: f32[3,16], index: 4, kind: input, shape index: {}]
  %s5 = inlined_call_operand.vmem [shape: f32[600,16], index: 5, kind: output, shape index: {}]
  %s6 = sld [smem:[#allocation0]]
  $region30: #{tpu_custom_call.1} parent=0
    _
  %s8 = ssub.s32 1, %s6
  %s9 = scalar_select 0, %s8, %s6
  // Predicated region
  $region2: #{tpu_custom_call.1} parent=0 // pred_check
    _
  $region3: #{tpu_custom_call.1} parent=0 // pred_check_branch
    %11 = sbr.rel (0) target = $region5
  $region4: #{tpu_custom_call.1} parent=0 // pred_region
    _
  $region5: #{tpu_custom_call.1} parent=0 // pred_fallthru
    _
  // Predicated region
  $region6: #{tpu_custom_call.1} parent=0 // pred_check
    _
  $region7: #{tpu_custom_call.1} parent=0 // pred_check_branch
    %13 = sbr.rel (0) target = $region9
  $region8: #{tpu_custom_call.1} parent=0 // pred_region
    _
  $region9: #{tpu_custom_call.1} parent=0 // pred_fallthru
    _
  // Predicated region
  $region10: #{tpu_custom_call.1} parent=0 // pred_check
    _
  $region11: #{tpu_custom_call.1} parent=0 // pred_check_branch
    %15 = sbr.rel (0) target = $region13
  $region12: #{tpu_custom_call.1} parent=0 // pred_region
    _
  $region13: #{tpu_custom_call.1} parent=0 // pred_fallthru
    _
  // Predicated region
  $region14: #{tpu_custom_call.1} parent=0 // pred_check
    _
  $region15: #{tpu_custom_call.1} parent=0 // pred_check_branch
    %17 = sbr.rel (0) target = $region17
  $region16: #{tpu_custom_call.1} parent=0 // pred_region
    _
  $region17: #{tpu_custom_call.1} parent=0 // pred_fallthru
    _
  // Predicated region
  $region18: #{tpu_custom_call.1} parent=0 // pred_check
    _
  $region19: #{tpu_custom_call.1} parent=0 // pred_check_branch
    %19 = sbr.rel (0) target = $region21
  $region20: #{tpu_custom_call.1} parent=0 // pred_region
    _
  $region21: #{tpu_custom_call.1} parent=0 // pred_fallthru
    _
  %v20 = vld [vmem:[%s0] sm:$0xff]
  %v21 = vld [vmem:[%s0 + $0x8] sm:$0xff]
  %v22 = vld [vmem:[%s0 + $0x10] sm:$0xff]
  %v23 = vld [vmem:[%s0 + $0x18] sm:$0xff]
  %v24 = vld [vmem:[%s0 + $0x20] sm:$0xff]
  %v25 = vld [vmem:[%s0 + $0x28] sm:$0xff]
  %v26 = vld [vmem:[%s0 + $0x30] sm:$0xff]
  %v27 = vld [vmem:[%s0 + $0x38] sm:$0xff]
  %v28 = vld [vmem:[%s0 + $0x40] sm:$0xff]
  %v29 = vld [vmem:[%s0 + $0x48] sm:$0xff]
  %v30 = vld [vmem:[%s0 + $0x50] sm:$0xff]
  %v31 = vld [vmem:[%s0 + $0x58] sm:$0xff]
  %v32 = vld [vmem:[%s0 + $0x60] sm:$0xff]
  %v33 = vld [vmem:[%s0 + $0x68] sm:$0xff]
  %v34 = vld [vmem:[%s0 + $0x70] sm:$0xff]
  %v35 = vld [vmem:[%s0 + $0x78] sm:$0xff]
  %v36 = vld [vmem:[%s0 + $0x80] sm:$0xff]
  %v37 = vld [vmem:[%s0 + $0x88] sm:$0xff]
  %v38 = vld [vmem:[%s0 + $0x90] sm:$0xff]
  %v39 = vld [vmem:[%s0 + $0x98] sm:$0xff]
  %v40 = vld [vmem:[%s0 + $0xa0] sm:$0xff]
  %v41 = vld [vmem:[%s0 + $0xa8] sm:$0xff]
  %v42 = vld [vmem:[%s0 + $0xb0] sm:$0xff]
  %v43 = vld [vmem:[%s0 + $0xb8] sm:$0xff]
  %v44 = vld [vmem:[%s0 + $0xc0] sm:$0xff]
  %v45 = vld [vmem:[%s0 + $0xc8] sm:$0xff]
  %v46 = vld [vmem:[%s0 + $0xd0] sm:$0xff]
  %v47 = vld [vmem:[%s0 + $0xd8] sm:$0xff]
  %v48 = vld [vmem:[%s0 + $0xe0] sm:$0xff]
  %v49 = vld [vmem:[%s0 + $0xe8] sm:$0xff]
  %v50 = vld [vmem:[%s0 + $0xf0] sm:$0xff]
  %v51 = vld [vmem:[%s0 + $0xf8] sm:$0xff]
  %v52 = vld [vmem:[%s0 + $0x100] sm:$0xff]
  %v53 = vld [vmem:[%s0 + $0x108] sm:$0xff]
  %v54 = vld [vmem:[%s0 + $0x110] sm:$0xff]
  %v55 = vld [vmem:[%s0 + $0x118] sm:$0xff]
  %v56 = vld [vmem:[%s0 + $0x120] sm:$0xff]
  %v57 = vld [vmem:[%s0 + $0x128] sm:$0xff]
  %v58 = vld [vmem:[%s0 + $0x130] sm:$0xff]
  %v59 = vld [vmem:[%s0 + $0x138] sm:$0xff]
  %v60 = vld [vmem:[%s0 + $0x140] sm:$0xff]
  %v61 = vld [vmem:[%s0 + $0x148] sm:$0xff]
  %v62 = vld [vmem:[%s0 + $0x150] sm:$0xff]
  %v63 = vld [vmem:[%s0 + $0x158] sm:$0xff]
  %v64 = vld [vmem:[%s0 + $0x160] sm:$0xff]
  %v65 = vld [vmem:[%s0 + $0x168] sm:$0xff]
  %v66 = vld [vmem:[%s0 + $0x170] sm:$0xff]
  %v67 = vld [vmem:[%s0 + $0x178] sm:$0xff]
  %v68 = vld [vmem:[%s0 + $0x180] sm:$0xff]
  %v69 = vld [vmem:[%s0 + $0x188] sm:$0xff]
  %v70 = vld [vmem:[%s0 + $0x190] sm:$0xff]
  %v71 = vld [vmem:[%s0 + $0x198] sm:$0xff]
  %v72 = vld [vmem:[%s0 + $0x1a0] sm:$0xff]
  %v73 = vld [vmem:[%s0 + $0x1a8] sm:$0xff]
  %v74 = vld [vmem:[%s0 + $0x1b0] sm:$0xff]
  %v75 = vld [vmem:[%s0 + $0x1b8] sm:$0xff]
  %v76 = vld [vmem:[%s0 + $0x1c0] sm:$0xff]
  %v77 = vld [vmem:[%s0 + $0x1c8] sm:$0xff]
  %v78 = vld [vmem:[%s0 + $0x1d0] sm:$0xff]
  %v79 = vld [vmem:[%s0 + $0x1d8] sm:$0xff]
  %v80 = vld [vmem:[%s0 + $0x1e0] sm:$0xff]
  %v81 = vld [vmem:[%s0 + $0x1e8] sm:$0xff]
  %v82 = vld [vmem:[%s0 + $0x1f0] sm:$0xff]
  %v83 = vld [vmem:[%s0 + $0x1f8] sm:$0xff]
  %v84 = vld [vmem:[%s0 + $0x200] sm:$0xff]
  %v85 = vld [vmem:[%s0 + $0x208] sm:$0xff]
  %v86 = vld [vmem:[%s0 + $0x210] sm:$0xff]
  %v87 = vld [vmem:[%s0 + $0x218] sm:$0xff]
  %v88 = vld [vmem:[%s0 + $0x220] sm:$0xff]
  %v89 = vld [vmem:[%s0 + $0x228] sm:$0xff]
  %v90 = vld [vmem:[%s0 + $0x230] sm:$0xff]
  %v91 = vld [vmem:[%s0 + $0x238] sm:$0xff]
  %v92 = vld [vmem:[%s0 + $0x240] sm:$0xff]
  %v93 = vld [vmem:[%s0 + $0x248] sm:$0xff]
  %v94 = vld [vmem:[%s0 + $0x250] sm:$0xff]
  %v95 = vld [vmem:[%s1] sm:$0xff]
  %v96 = vld [vmem:[%s1 + $0x8] sm:$0xff]
  %v97 = vld [vmem:[%s1 + $0x10] sm:$0xff]
  %v98 = vld [vmem:[%s1 + $0x18] sm:$0xff]
  %v99 = vld [vmem:[%s2] sm:$0x1]
  %v101 = vperm.slane %v99, 0
  %vm103 = vcmask 261120
  %v105 = vsel %vm103, %v20, 0
  %v108 = vsel %vm103, %v21, 0
  %v111 = vsel %vm103, %v22, 0
  %v114 = vsel %vm103, %v23, 0
  %v117 = vsel %vm103, %v24, 0
  %v120 = vsel %vm103, %v25, 0
  %v123 = vsel %vm103, %v26, 0
  %v126 = vsel %vm103, %v27, 0
  %v129 = vsel %vm103, %v28, 0
  %v132 = vsel %vm103, %v29, 0
  %v135 = vsel %vm103, %v30, 0
  %v138 = vsel %vm103, %v31, 0
  %v141 = vsel %vm103, %v32, 0
  %v144 = vsel %vm103, %v33, 0
  %v147 = vsel %vm103, %v34, 0
  %v150 = vsel %vm103, %v35, 0
  %v153 = vsel %vm103, %v36, 0
  %v156 = vsel %vm103, %v37, 0
  %v159 = vsel %vm103, %v38, 0
  %v162 = vsel %vm103, %v39, 0
  %v165 = vsel %vm103, %v40, 0
  %v168 = vsel %vm103, %v41, 0
  %v171 = vsel %vm103, %v42, 0
  %v174 = vsel %vm103, %v43, 0
  %v177 = vsel %vm103, %v44, 0
  %v180 = vsel %vm103, %v45, 0
  %v183 = vsel %vm103, %v46, 0
  %v186 = vsel %vm103, %v47, 0
  %v189 = vsel %vm103, %v48, 0
  %v192 = vsel %vm103, %v49, 0
  %v195 = vsel %vm103, %v50, 0
  %v198 = vsel %vm103, %v51, 0
  %v201 = vsel %vm103, %v52, 0
  %v204 = vsel %vm103, %v53, 0
  %v207 = vsel %vm103, %v54, 0
  %v210 = vsel %vm103, %v55, 0
  %v213 = vsel %vm103, %v56, 0
  %v216 = vsel %vm103, %v57, 0
  %v219 = vsel %vm103, %v58, 0
  %v222 = vsel %vm103, %v59, 0
  %v225 = vsel %vm103, %v60, 0
  %v228 = vsel %vm103, %v61, 0
  %v231 = vsel %vm103, %v62, 0
  %v234 = vsel %vm103, %v63, 0
  %v237 = vsel %vm103, %v64, 0
  %v240 = vsel %vm103, %v65, 0
  %v243 = vsel %vm103, %v66, 0
  %v246 = vsel %vm103, %v67, 0
  %v249 = vsel %vm103, %v68, 0
  %v252 = vsel %vm103, %v69, 0
  %v255 = vsel %vm103, %v70, 0
  %v258 = vsel %vm103, %v71, 0
  %v261 = vsel %vm103, %v72, 0
  %v264 = vsel %vm103, %v73, 0
  %v267 = vsel %vm103, %v74, 0
  %v270 = vsel %vm103, %v75, 0
  %v273 = vsel %vm103, %v76, 0
  %v276 = vsel %vm103, %v77, 0
  %v279 = vsel %vm103, %v78, 0
  %v282 = vsel %vm103, %v79, 0
  %v285 = vsel %vm103, %v80, 0
  %v288 = vsel %vm103, %v81, 0
  %v291 = vsel %vm103, %v82, 0
  %v294 = vsel %vm103, %v83, 0
  %v297 = vsel %vm103, %v84, 0
  %v300 = vsel %vm103, %v85, 0
  %v303 = vsel %vm103, %v86, 0
  %v306 = vsel %vm103, %v87, 0
  %v309 = vsel %vm103, %v88, 0
  %v312 = vsel %vm103, %v89, 0
  %v315 = vsel %vm103, %v90, 0
  %v318 = vsel %vm103, %v91, 0
  %v321 = vsel %vm103, %v92, 0
  %v324 = vsel %vm103, %v93, 0
  %v327 = vsel %vm103, %v94, 0
  %329 = vmatpush.msra.mxu0 0.0
  %330 = vmatpush.msra.mxu0 0.0
  %331 = vmatpush.msra.mxu0 0.0
  %332 = vmatpush.msra.mxu0 0.0
  %333 = vmatpush.msra.mxu0 0.0
  %334 = vmatpush.msra.mxu0 0.0
  %335 = vmatpush.msra.mxu0 0.0
  %336 = vmatpush.msra.mxu0 0.0
  %337 = vmatpush.msra.mxu0 0.0
  %338 = vmatpush.msra.mxu0 0.0
  %339 = vmatpush.msra.mxu0 0.0
  %340 = vmatpush.msra.mxu0 0.0
  %341 = vmatpush.msra.mxu0 %v98
  %342 = vmatpush.msra.mxu0 %v97
  %343 = vmatpush.msra.mxu0 %v96
  %344 = vmatpush.msra.mxu0 %v95
  %345 = vmatmul.f32.gmra.mxu0 %v105
  %v346 = vpop.f32.mrf.mxu0
  %v347 = vadd.f32 %v101, %v346
  %348 = vmatmul.f32.gmra.mxu0 %v108
  %v349 = vpop.f32.mrf.mxu0
  %v350 = vadd.f32 %v101, %v349
  %351 = vmatmul.f32.gmra.mxu0 %v111
  %v352 = vpop.f32.mrf.mxu0
  %v353 = vadd.f32 %v101, %v352
  %354 = vmatmul.f32.gmra.mxu0 %v114
  %v355 = vpop.f32.mrf.mxu0
  %v356 = vadd.f32 %v101, %v355
  %357 = vmatmul.f32.gmra.mxu0 %v117
  %v358 = vpop.f32.mrf.mxu0
  %v359 = vadd.f32 %v101, %v358
  %360 = vmatmul.f32.gmra.mxu0 %v120
  %v361 = vpop.f32.mrf.mxu0
  %v362 = vadd.f32 %v101, %v361
  %363 = vmatmul.f32.gmra.mxu0 %v123
  %v364 = vpop.f32.mrf.mxu0
  %v365 = vadd.f32 %v101, %v364
  %366 = vmatmul.f32.gmra.mxu0 %v126
  %v367 = vpop.f32.mrf.mxu0
  %v368 = vadd.f32 %v101, %v367
  %369 = vmatmul.f32.gmra.mxu0 %v129
  %v370 = vpop.f32.mrf.mxu0
  %v371 = vadd.f32 %v101, %v370
  %372 = vmatmul.f32.gmra.mxu0 %v132
  %v373 = vpop.f32.mrf.mxu0
  %v374 = vadd.f32 %v101, %v373
  %375 = vmatmul.f32.gmra.mxu0 %v135
  %v376 = vpop.f32.mrf.mxu0
  %v377 = vadd.f32 %v101, %v376
  %378 = vmatmul.f32.gmra.mxu0 %v138
  %v379 = vpop.f32.mrf.mxu0
  %v380 = vadd.f32 %v101, %v379
  %381 = vmatmul.f32.gmra.mxu0 %v141
  %v382 = vpop.f32.mrf.mxu0
  %v383 = vadd.f32 %v101, %v382
  %384 = vmatmul.f32.gmra.mxu0 %v144
  %v385 = vpop.f32.mrf.mxu0
  %v386 = vadd.f32 %v101, %v385
  %387 = vmatmul.f32.gmra.mxu0 %v147
  %v388 = vpop.f32.mrf.mxu0
  %v389 = vadd.f32 %v101, %v388
  %390 = vmatmul.f32.gmra.mxu0 %v150
  %v391 = vpop.f32.mrf.mxu0
  %v392 = vadd.f32 %v101, %v391
  %393 = vmatmul.f32.gmra.mxu0 %v153
  %v394 = vpop.f32.mrf.mxu0
  %v395 = vadd.f32 %v101, %v394
  %396 = vmatmul.f32.gmra.mxu0 %v156
  %v397 = vpop.f32.mrf.mxu0
  %v398 = vadd.f32 %v101, %v397
  %399 = vmatmul.f32.gmra.mxu0 %v159
  %v400 = vpop.f32.mrf.mxu0
  %v401 = vadd.f32 %v101, %v400
  %402 = vmatmul.f32.gmra.mxu0 %v162
  %v403 = vpop.f32.mrf.mxu0
  %v404 = vadd.f32 %v101, %v403
  %405 = vmatmul.f32.gmra.mxu0 %v165
  %v406 = vpop.f32.mrf.mxu0
  %v407 = vadd.f32 %v101, %v406
  %408 = vmatmul.f32.gmra.mxu0 %v168
  %v409 = vpop.f32.mrf.mxu0
  %v410 = vadd.f32 %v101, %v409
  %411 = vmatmul.f32.gmra.mxu0 %v171
  %v412 = vpop.f32.mrf.mxu0
  %v413 = vadd.f32 %v101, %v412
  %414 = vmatmul.f32.gmra.mxu0 %v174
  %v415 = vpop.f32.mrf.mxu0
  %v416 = vadd.f32 %v101, %v415
  %417 = vmatmul.f32.gmra.mxu0 %v177
  %v418 = vpop.f32.mrf.mxu0
  %v419 = vadd.f32 %v101, %v418
  %420 = vmatmul.f32.gmra.mxu0 %v180
  %v421 = vpop.f32.mrf.mxu0
  %v422 = vadd.f32 %v101, %v421
  %423 = vmatmul.f32.gmra.mxu0 %v183
  %v424 = vpop.f32.mrf.mxu0
  %v425 = vadd.f32 %v101, %v424
  %426 = vmatmul.f32.gmra.mxu0 %v186
  %v427 = vpop.f32.mrf.mxu0
  %v428 = vadd.f32 %v101, %v427
  %429 = vmatmul.f32.gmra.mxu0 %v189
  %v430 = vpop.f32.mrf.mxu0
  %v431 = vadd.f32 %v101, %v430
  %432 = vmatmul.f32.gmra.mxu0 %v192
  %v433 = vpop.f32.mrf.mxu0
  %v434 = vadd.f32 %v101, %v433
  %435 = vmatmul.f32.gmra.mxu0 %v195
  %v436 = vpop.f32.mrf.mxu0
  %v437 = vadd.f32 %v101, %v436
  %438 = vmatmul.f32.gmra.mxu0 %v198
  %v439 = vpop.f32.mrf.mxu0
  %v440 = vadd.f32 %v101, %v439
  %441 = vmatmul.f32.gmra.mxu0 %v201
  %v442 = vpop.f32.mrf.mxu0
  %v443 = vadd.f32 %v101, %v442
  %444 = vmatmul.f32.gmra.mxu0 %v204
  %v445 = vpop.f32.mrf.mxu0
  %v446 = vadd.f32 %v101, %v445
  %447 = vmatmul.f32.gmra.mxu0 %v207
  %v448 = vpop.f32.mrf.mxu0
  %v449 = vadd.f32 %v101, %v448
  %450 = vmatmul.f32.gmra.mxu0 %v210
  %v451 = vpop.f32.mrf.mxu0
  %v452 = vadd.f32 %v101, %v451
  %453 = vmatmul.f32.gmra.mxu0 %v213
  %v454 = vpop.f32.mrf.mxu0
  %v455 = vadd.f32 %v101, %v454
  %456 = vmatmul.f32.gmra.mxu0 %v216
  %v457 = vpop.f32.mrf.mxu0
  %v458 = vadd.f32 %v101, %v457
  %459 = vmatmul.f32.gmra.mxu0 %v219
  %v460 = vpop.f32.mrf.mxu0
  %v461 = vadd.f32 %v101, %v460
  %462 = vmatmul.f32.gmra.mxu0 %v222
  %v463 = vpop.f32.mrf.mxu0
  %v464 = vadd.f32 %v101, %v463
  %465 = vmatmul.f32.gmra.mxu0 %v225
  %v466 = vpop.f32.mrf.mxu0
  %v467 = vadd.f32 %v101, %v466
  %468 = vmatmul.f32.gmra.mxu0 %v228
  %v469 = vpop.f32.mrf.mxu0
  %v470 = vadd.f32 %v101, %v469
  %471 = vmatmul.f32.gmra.mxu0 %v231
  %v472 = vpop.f32.mrf.mxu0
  %v473 = vadd.f32 %v101, %v472
  %474 = vmatmul.f32.gmra.mxu0 %v234
  %v475 = vpop.f32.mrf.mxu0
  %v476 = vadd.f32 %v101, %v475
  %477 = vmatmul.f32.gmra.mxu0 %v237
  %v478 = vpop.f32.mrf.mxu0
  %v479 = vadd.f32 %v101, %v478
  %480 = vmatmul.f32.gmra.mxu0 %v240
  %v481 = vpop.f32.mrf.mxu0
  %v482 = vadd.f32 %v101, %v481
  %483 = vmatmul.f32.gmra.mxu0 %v243
  %v484 = vpop.f32.mrf.mxu0
  %v485 = vadd.f32 %v101, %v484
  %486 = vmatmul.f32.gmra.mxu0 %v246
  %v487 = vpop.f32.mrf.mxu0
  %v488 = vadd.f32 %v101, %v487
  %489 = vmatmul.f32.gmra.mxu0 %v249
  %v490 = vpop.f32.mrf.mxu0
  %v491 = vadd.f32 %v101, %v490
  %492 = vmatmul.f32.gmra.mxu0 %v252
  %v493 = vpop.f32.mrf.mxu0
  %v494 = vadd.f32 %v101, %v493
  %495 = vmatmul.f32.gmra.mxu0 %v255
  %v496 = vpop.f32.mrf.mxu0
  %v497 = vadd.f32 %v101, %v496
  %498 = vmatmul.f32.gmra.mxu0 %v258
  %v499 = vpop.f32.mrf.mxu0
  %v500 = vadd.f32 %v101, %v499
  %501 = vmatmul.f32.gmra.mxu0 %v261
  %v502 = vpop.f32.mrf.mxu0
  %v503 = vadd.f32 %v101, %v502
  %504 = vmatmul.f32.gmra.mxu0 %v264
  %v505 = vpop.f32.mrf.mxu0
  %v506 = vadd.f32 %v101, %v505
  %507 = vmatmul.f32.gmra.mxu0 %v267
  %v508 = vpop.f32.mrf.mxu0
  %v509 = vadd.f32 %v101, %v508
  %510 = vmatmul.f32.gmra.mxu0 %v270
  %v511 = vpop.f32.mrf.mxu0
  %v512 = vadd.f32 %v101, %v511
  %513 = vmatmul.f32.gmra.mxu0 %v273
  %v514 = vpop.f32.mrf.mxu0
  %v515 = vadd.f32 %v101, %v514
  %516 = vmatmul.f32.gmra.mxu0 %v276
  %v517 = vpop.f32.mrf.mxu0
  %v518 = vadd.f32 %v101, %v517
  %519 = vmatmul.f32.gmra.mxu0 %v279
  %v520 = vpop.f32.mrf.mxu0
  %v521 = vadd.f32 %v101, %v520
  %522 = vmatmul.f32.gmra.mxu0 %v282
  %v523 = vpop.f32.mrf.mxu0
  %v524 = vadd.f32 %v101, %v523
  %525 = vmatmul.f32.gmra.mxu0 %v285
  %v526 = vpop.f32.mrf.mxu0
  %v527 = vadd.f32 %v101, %v526
  %528 = vmatmul.f32.gmra.mxu0 %v288
  %v529 = vpop.f32.mrf.mxu0
  %v530 = vadd.f32 %v101, %v529
  %531 = vmatmul.f32.gmra.mxu0 %v291
  %v532 = vpop.f32.mrf.mxu0
  %v533 = vadd.f32 %v101, %v532
  %534 = vmatmul.f32.gmra.mxu0 %v294
  %v535 = vpop.f32.mrf.mxu0
  %v536 = vadd.f32 %v101, %v535
  %537 = vmatmul.f32.gmra.mxu0 %v297
  %v538 = vpop.f32.mrf.mxu0
  %v539 = vadd.f32 %v101, %v538
  %540 = vmatmul.f32.gmra.mxu0 %v300
  %v541 = vpop.f32.mrf.mxu0
  %v542 = vadd.f32 %v101, %v541
  %543 = vmatmul.f32.gmra.mxu0 %v303
  %v544 = vpop.f32.mrf.mxu0
  %v545 = vadd.f32 %v101, %v544
  %546 = vmatmul.f32.gmra.mxu0 %v306
  %v547 = vpop.f32.mrf.mxu0
  %v548 = vadd.f32 %v101, %v547
  %549 = vmatmul.f32.gmra.mxu0 %v309
  %v550 = vpop.f32.mrf.mxu0
  %v551 = vadd.f32 %v101, %v550
  %552 = vmatmul.f32.gmra.mxu0 %v312
  %v553 = vpop.f32.mrf.mxu0
  %v554 = vadd.f32 %v101, %v553
  %555 = vmatmul.f32.gmra.mxu0 %v315
  %v556 = vpop.f32.mrf.mxu0
  %v557 = vadd.f32 %v101, %v556
  %558 = vmatmul.f32.gmra.mxu0 %v318
  %v559 = vpop.f32.mrf.mxu0
  %v560 = vadd.f32 %v101, %v559
  %561 = vmatmul.f32.gmra.mxu0 %v321
  %v562 = vpop.f32.mrf.mxu0
  %v563 = vadd.f32 %v101, %v562
  %564 = vmatmul.f32.gmra.mxu0 %v324
  %v565 = vpop.f32.mrf.mxu0
  %v566 = vadd.f32 %v101, %v565
  %567 = vmatmul.f32.gmra.mxu0 %v327
  %v568 = vpop.f32.mrf.mxu0
  %v569 = vadd.f32 %v101, %v568
  %570 = vdwg.mxu0
  %v571 = vmax.f32 %v347, 0.0
  %v572 = vmax.f32 %v350, 0.0
  %v573 = vmax.f32 %v353, 0.0
  %v574 = vmax.f32 %v356, 0.0
  %v575 = vmax.f32 %v359, 0.0
  %v576 = vmax.f32 %v362, 0.0
  %v577 = vmax.f32 %v365, 0.0
  %v578 = vmax.f32 %v368, 0.0
  %v579 = vmax.f32 %v371, 0.0
  %v580 = vmax.f32 %v374, 0.0
  %v581 = vmax.f32 %v377, 0.0
  %v582 = vmax.f32 %v380, 0.0
  %v583 = vmax.f32 %v383, 0.0
  %v584 = vmax.f32 %v386, 0.0
  %v585 = vmax.f32 %v389, 0.0
  %v586 = vmax.f32 %v392, 0.0
  %v587 = vmax.f32 %v395, 0.0
  %v588 = vmax.f32 %v398, 0.0
  %v589 = vmax.f32 %v401, 0.0
  %v590 = vmax.f32 %v404, 0.0
  %v591 = vmax.f32 %v407, 0.0
  %v592 = vmax.f32 %v410, 0.0
  %v593 = vmax.f32 %v413, 0.0
  %v594 = vmax.f32 %v416, 0.0
  %v595 = vmax.f32 %v419, 0.0
  %v596 = vmax.f32 %v422, 0.0
  %v597 = vmax.f32 %v425, 0.0
  %v598 = vmax.f32 %v428, 0.0
  %v599 = vmax.f32 %v431, 0.0
  %v600 = vmax.f32 %v434, 0.0
  %v601 = vmax.f32 %v437, 0.0
  %v602 = vmax.f32 %v440, 0.0
  %v603 = vmax.f32 %v443, 0.0
  %v604 = vmax.f32 %v446, 0.0
  %v605 = vmax.f32 %v449, 0.0
  %v606 = vmax.f32 %v452, 0.0
  %v607 = vmax.f32 %v455, 0.0
  %v608 = vmax.f32 %v458, 0.0
  %v609 = vmax.f32 %v461, 0.0
  %v610 = vmax.f32 %v464, 0.0
  %v611 = vmax.f32 %v467, 0.0
  %v612 = vmax.f32 %v470, 0.0
  %v613 = vmax.f32 %v473, 0.0
  %v614 = vmax.f32 %v476, 0.0
  %v615 = vmax.f32 %v479, 0.0
  %v616 = vmax.f32 %v482, 0.0
  %v617 = vmax.f32 %v485, 0.0
  %v618 = vmax.f32 %v488, 0.0
  %v619 = vmax.f32 %v491, 0.0
  %v620 = vmax.f32 %v494, 0.0
  %v621 = vmax.f32 %v497, 0.0
  %v622 = vmax.f32 %v500, 0.0
  %v623 = vmax.f32 %v503, 0.0
  %v624 = vmax.f32 %v506, 0.0
  %v625 = vmax.f32 %v509, 0.0
  %v626 = vmax.f32 %v512, 0.0
  %v627 = vmax.f32 %v515, 0.0
  %v628 = vmax.f32 %v518, 0.0
  %v629 = vmax.f32 %v521, 0.0
  %v630 = vmax.f32 %v524, 0.0
  %v631 = vmax.f32 %v527, 0.0
  %v632 = vmax.f32 %v530, 0.0
  %v633 = vmax.f32 %v533, 0.0
  %v634 = vmax.f32 %v536, 0.0
  %v635 = vmax.f32 %v539, 0.0
  %v636 = vmax.f32 %v542, 0.0
  %v637 = vmax.f32 %v545, 0.0
  %v638 = vmax.f32 %v548, 0.0
  %v639 = vmax.f32 %v551, 0.0
  %v640 = vmax.f32 %v554, 0.0
  %v641 = vmax.f32 %v557, 0.0
  %v642 = vmax.f32 %v560, 0.0
  %v643 = vmax.f32 %v563, 0.0
  %v644 = vmax.f32 %v566, 0.0
  %v645 = vmax.f32 %v569, 0.0
  %v646 = vld [vmem:[%s3] sm:$0xff]
  %v647 = vld [vmem:[%s3 + $0x8] sm:$0xff]
  %v648 = vld [vmem:[%s3 + $0x10] sm:$0xff]
  %v649 = vld [vmem:[%s3 + $0x18] sm:$0xff]
  %v650 = vld [vmem:[%s3 + $0x20] sm:$0xff]
  %v651 = vld [vmem:[%s3 + $0x28] sm:$0xff]
  %v652 = vld [vmem:[%s3 + $0x30] sm:$0xff]
  %v653 = vld [vmem:[%s3 + $0x38] sm:$0xff]
  %v654 = vld [vmem:[%s4] sm:$0x1]
  %v655 = vperm.slane %v654, 0
  %vm656 = vcmask 523264
  %v658 = vsel %vm656, %v571, 0
  %v661 = vsel %vm656, %v572, 0
  %v664 = vsel %vm656, %v573, 0
  %v667 = vsel %vm656, %v574, 0
  %v670 = vsel %vm656, %v575, 0
  %v673 = vsel %vm656, %v576, 0
  %v676 = vsel %vm656, %v577, 0
  %v679 = vsel %vm656, %v578, 0
  %v682 = vsel %vm656, %v579, 0
  %v685 = vsel %vm656, %v580, 0
  %v688 = vsel %vm656, %v581, 0
  %v691 = vsel %vm656, %v582, 0
  %v694 = vsel %vm656, %v583, 0
  %v697 = vsel %vm656, %v584, 0
  %v700 = vsel %vm656, %v585, 0
  %v703 = vsel %vm656, %v586, 0
  %v706 = vsel %vm656, %v587, 0
  %v709 = vsel %vm656, %v588, 0
  %v712 = vsel %vm656, %v589, 0
  %v715 = vsel %vm656, %v590, 0
  %v718 = vsel %vm656, %v591, 0
  %v721 = vsel %vm656, %v592, 0
  %v724 = vsel %vm656, %v593, 0
  %v727 = vsel %vm656, %v594, 0
  %v730 = vsel %vm656, %v595, 0
  %v733 = vsel %vm656, %v596, 0
  %v736 = vsel %vm656, %v597, 0
  %v739 = vsel %vm656, %v598, 0
  %v742 = vsel %vm656, %v599, 0
  %v745 = vsel %vm656, %v600, 0
  %v748 = vsel %vm656, %v601, 0
  %v751 = vsel %vm656, %v602, 0
  %v754 = vsel %vm656, %v603, 0
  %v757 = vsel %vm656, %v604, 0
  %v760 = vsel %vm656, %v605, 0
  %v763 = vsel %vm656, %v606, 0
  %v766 = vsel %vm656, %v607, 0
  %v769 = vsel %vm656, %v608, 0
  %v772 = vsel %vm656, %v609, 0
  %v775 = vsel %vm656, %v610, 0
  %v778 = vsel %vm656, %v611, 0
  %v781 = vsel %vm656, %v612, 0
  %v784 = vsel %vm656, %v613, 0
  %v787 = vsel %vm656, %v614, 0
  %v790 = vsel %vm656, %v615, 0
  %v793 = vsel %vm656, %v616, 0
  %v796 = vsel %vm656, %v617, 0
  %v799 = vsel %vm656, %v618, 0
  %v802 = vsel %vm656, %v619, 0
  %v805 = vsel %vm656, %v620, 0
  %v808 = vsel %vm656, %v621, 0
  %v811 = vsel %vm656, %v622, 0
  %v814 = vsel %vm656, %v623, 0
  %v817 = vsel %vm656, %v624, 0
  %v820 = vsel %vm656, %v625, 0
  %v823 = vsel %vm656, %v626, 0
  %v826 = vsel %vm656, %v627, 0
  %v829 = vsel %vm656, %v628, 0
  %v832 = vsel %vm656, %v629, 0
  %v835 = vsel %vm656, %v630, 0
  %v838 = vsel %vm656, %v631, 0
  %v841 = vsel %vm656, %v632, 0
  %v844 = vsel %vm656, %v633, 0
  %v847 = vsel %vm656, %v634, 0
  %v850 = vsel %vm656, %v635, 0
  %v853 = vsel %vm656, %v636, 0
  %v856 = vsel %vm656, %v637, 0
  %v859 = vsel %vm656, %v638, 0
  %v862 = vsel %vm656, %v639, 0
  %v865 = vsel %vm656, %v640, 0
  %v868 = vsel %vm656, %v641, 0
  %v871 = vsel %vm656, %v642, 0
  %v874 = vsel %vm656, %v643, 0
  %v877 = vsel %vm656, %v644, 0
  %v880 = vsel %vm656, %v645, 0
  %882 = vmatpush.msra.mxu0 0.0
  %883 = vmatpush.msra.mxu0 0.0
  %884 = vmatpush.msra.mxu0 0.0
  %885 = vmatpush.msra.mxu0 0.0
  %886 = vmatpush.msra.mxu0 0.0
  %887 = vmatpush.msra.mxu0 0.0
  %888 = vmatpush.msra.mxu0 0.0
  %889 = vmatpush.msra.mxu0 0.0
  %890 = vmatpush.msra.mxu0 %v653
  %891 = vmatpush.msra.mxu0 %v652
  %892 = vmatpush.msra.mxu0 %v651
  %893 = vmatpush.msra.mxu0 %v650
  %894 = vmatpush.msra.mxu0 %v649
  %895 = vmatpush.msra.mxu0 %v648
  %896 = vmatpush.msra.mxu0 %v647
  %897 = vmatpush.msra.mxu0 %v646
  %898 = vmatmul.f32.gmra.mxu0 %v658
  %v899 = vpop.f32.mrf.mxu0
  %v900 = vadd.f32 %v655, %v899
  %901 = vmatmul.f32.gmra.mxu0 %v661
  %v902 = vpop.f32.mrf.mxu0
  %v903 = vadd.f32 %v655, %v902
  %904 = vmatmul.f32.gmra.mxu0 %v664
  %v905 = vpop.f32.mrf.mxu0
  %v906 = vadd.f32 %v655, %v905
  %907 = vmatmul.f32.gmra.mxu0 %v667
  %v908 = vpop.f32.mrf.mxu0
  %v909 = vadd.f32 %v655, %v908
  %910 = vmatmul.f32.gmra.mxu0 %v670
  %v911 = vpop.f32.mrf.mxu0
  %v912 = vadd.f32 %v655, %v911
  %913 = vmatmul.f32.gmra.mxu0 %v673
  %v914 = vpop.f32.mrf.mxu0
  %v915 = vadd.f32 %v655, %v914
  %916 = vmatmul.f32.gmra.mxu0 %v676
  %v917 = vpop.f32.mrf.mxu0
  %v918 = vadd.f32 %v655, %v917
  %919 = vmatmul.f32.gmra.mxu0 %v679
  %v920 = vpop.f32.mrf.mxu0
  %v921 = vadd.f32 %v655, %v920
  %922 = vmatmul.f32.gmra.mxu0 %v682
  %v923 = vpop.f32.mrf.mxu0
  %v924 = vadd.f32 %v655, %v923
  %925 = vmatmul.f32.gmra.mxu0 %v685
  %v926 = vpop.f32.mrf.mxu0
  %v927 = vadd.f32 %v655, %v926
  %928 = vmatmul.f32.gmra.mxu0 %v688
  %v929 = vpop.f32.mrf.mxu0
  %v930 = vadd.f32 %v655, %v929
  %931 = vmatmul.f32.gmra.mxu0 %v691
  %v932 = vpop.f32.mrf.mxu0
  %v933 = vadd.f32 %v655, %v932
  %934 = vmatmul.f32.gmra.mxu0 %v694
  %v935 = vpop.f32.mrf.mxu0
  %v936 = vadd.f32 %v655, %v935
  %937 = vmatmul.f32.gmra.mxu0 %v697
  %v938 = vpop.f32.mrf.mxu0
  %v939 = vadd.f32 %v655, %v938
  %940 = vmatmul.f32.gmra.mxu0 %v700
  %v941 = vpop.f32.mrf.mxu0
  %v942 = vadd.f32 %v655, %v941
  %943 = vmatmul.f32.gmra.mxu0 %v703
  %v944 = vpop.f32.mrf.mxu0
  %v945 = vadd.f32 %v655, %v944
  %946 = vmatmul.f32.gmra.mxu0 %v706
  %v947 = vpop.f32.mrf.mxu0
  %v948 = vadd.f32 %v655, %v947
  %949 = vmatmul.f32.gmra.mxu0 %v709
  %v950 = vpop.f32.mrf.mxu0
  %v951 = vadd.f32 %v655, %v950
  %952 = vmatmul.f32.gmra.mxu0 %v712
  %v953 = vpop.f32.mrf.mxu0
  %v954 = vadd.f32 %v655, %v953
  %955 = vmatmul.f32.gmra.mxu0 %v715
  %v956 = vpop.f32.mrf.mxu0
  %v957 = vadd.f32 %v655, %v956
  %958 = vmatmul.f32.gmra.mxu0 %v718
  %v959 = vpop.f32.mrf.mxu0
  %v960 = vadd.f32 %v655, %v959
  %961 = vmatmul.f32.gmra.mxu0 %v721
  %v962 = vpop.f32.mrf.mxu0
  %v963 = vadd.f32 %v655, %v962
  %964 = vmatmul.f32.gmra.mxu0 %v724
  %v965 = vpop.f32.mrf.mxu0
  %v966 = vadd.f32 %v655, %v965
  %967 = vmatmul.f32.gmra.mxu0 %v727
  %v968 = vpop.f32.mrf.mxu0
  %v969 = vadd.f32 %v655, %v968
  %970 = vmatmul.f32.gmra.mxu0 %v730
  %v971 = vpop.f32.mrf.mxu0
  %v972 = vadd.f32 %v655, %v971
  %973 = vmatmul.f32.gmra.mxu0 %v733
  %v974 = vpop.f32.mrf.mxu0
  %v975 = vadd.f32 %v655, %v974
  %976 = vmatmul.f32.gmra.mxu0 %v736
  %v977 = vpop.f32.mrf.mxu0
  %v978 = vadd.f32 %v655, %v977
  %979 = vmatmul.f32.gmra.mxu0 %v739
  %v980 = vpop.f32.mrf.mxu0
  %v981 = vadd.f32 %v655, %v980
  %982 = vmatmul.f32.gmra.mxu0 %v742
  %v983 = vpop.f32.mrf.mxu0
  %v984 = vadd.f32 %v655, %v983
  %985 = vmatmul.f32.gmra.mxu0 %v745
  %v986 = vpop.f32.mrf.mxu0
  %v987 = vadd.f32 %v655, %v986
  %988 = vmatmul.f32.gmra.mxu0 %v748
  %v989 = vpop.f32.mrf.mxu0
  %v990 = vadd.f32 %v655, %v989
  %991 = vmatmul.f32.gmra.mxu0 %v751
  %v992 = vpop.f32.mrf.mxu0
  %v993 = vadd.f32 %v655, %v992
  %994 = vmatmul.f32.gmra.mxu0 %v754
  %v995 = vpop.f32.mrf.mxu0
  %v996 = vadd.f32 %v655, %v995
  %997 = vmatmul.f32.gmra.mxu0 %v757
  %v998 = vpop.f32.mrf.mxu0
  %v999 = vadd.f32 %v655, %v998
  %1000 = vmatmul.f32.gmra.mxu0 %v760
  %v1001 = vpop.f32.mrf.mxu0
  %v1002 = vadd.f32 %v655, %v1001
  %1003 = vmatmul.f32.gmra.mxu0 %v763
  %v1004 = vpop.f32.mrf.mxu0
  %v1005 = vadd.f32 %v655, %v1004
  %1006 = vmatmul.f32.gmra.mxu0 %v766
  %v1007 = vpop.f32.mrf.mxu0
  %v1008 = vadd.f32 %v655, %v1007
  %1009 = vmatmul.f32.gmra.mxu0 %v769
  %v1010 = vpop.f32.mrf.mxu0
  %v1011 = vadd.f32 %v655, %v1010
  %1012 = vmatmul.f32.gmra.mxu0 %v772
  %v1013 = vpop.f32.mrf.mxu0
  %v1014 = vadd.f32 %v655, %v1013
  %1015 = vmatmul.f32.gmra.mxu0 %v775
  %v1016 = vpop.f32.mrf.mxu0
  %v1017 = vadd.f32 %v655, %v1016
  %1018 = vmatmul.f32.gmra.mxu0 %v778
  %v1019 = vpop.f32.mrf.mxu0
  %v1020 = vadd.f32 %v655, %v1019
  %1021 = vmatmul.f32.gmra.mxu0 %v781
  %v1022 = vpop.f32.mrf.mxu0
  %v1023 = vadd.f32 %v655, %v1022
  %1024 = vmatmul.f32.gmra.mxu0 %v784
  %v1025 = vpop.f32.mrf.mxu0
  %v1026 = vadd.f32 %v655, %v1025
  %1027 = vmatmul.f32.gmra.mxu0 %v787
  %v1028 = vpop.f32.mrf.mxu0
  %v1029 = vadd.f32 %v655, %v1028
  %1030 = vmatmul.f32.gmra.mxu0 %v790
  %v1031 = vpop.f32.mrf.mxu0
  %v1032 = vadd.f32 %v655, %v1031
  %1033 = vmatmul.f32.gmra.mxu0 %v793
  %v1034 = vpop.f32.mrf.mxu0
  %v1035 = vadd.f32 %v655, %v1034
  %1036 = vmatmul.f32.gmra.mxu0 %v796
  %v1037 = vpop.f32.mrf.mxu0
  %v1038 = vadd.f32 %v655, %v1037
  %1039 = vmatmul.f32.gmra.mxu0 %v799
  %v1040 = vpop.f32.mrf.mxu0
  %v1041 = vadd.f32 %v655, %v1040
  %1042 = vmatmul.f32.gmra.mxu0 %v802
  %v1043 = vpop.f32.mrf.mxu0
  %v1044 = vadd.f32 %v655, %v1043
  %1045 = vmatmul.f32.gmra.mxu0 %v805
  %v1046 = vpop.f32.mrf.mxu0
  %v1047 = vadd.f32 %v655, %v1046
  %1048 = vmatmul.f32.gmra.mxu0 %v808
  %v1049 = vpop.f32.mrf.mxu0
  %v1050 = vadd.f32 %v655, %v1049
  %1051 = vmatmul.f32.gmra.mxu0 %v811
  %v1052 = vpop.f32.mrf.mxu0
  %v1053 = vadd.f32 %v655, %v1052
  %1054 = vmatmul.f32.gmra.mxu0 %v814
  %v1055 = vpop.f32.mrf.mxu0
  %v1056 = vadd.f32 %v655, %v1055
  %1057 = vmatmul.f32.gmra.mxu0 %v817
  %v1058 = vpop.f32.mrf.mxu0
  %v1059 = vadd.f32 %v655, %v1058
  %1060 = vmatmul.f32.gmra.mxu0 %v820
  %v1061 = vpop.f32.mrf.mxu0
  %v1062 = vadd.f32 %v655, %v1061
  %1063 = vmatmul.f32.gmra.mxu0 %v823
  %v1064 = vpop.f32.mrf.mxu0
  %v1065 = vadd.f32 %v655, %v1064
  %1066 = vmatmul.f32.gmra.mxu0 %v826
  %v1067 = vpop.f32.mrf.mxu0
  %v1068 = vadd.f32 %v655, %v1067
  %1069 = vmatmul.f32.gmra.mxu0 %v829
  %v1070 = vpop.f32.mrf.mxu0
  %v1071 = vadd.f32 %v655, %v1070
  %1072 = vmatmul.f32.gmra.mxu0 %v832
  %v1073 = vpop.f32.mrf.mxu0
  %v1074 = vadd.f32 %v655, %v1073
  %1075 = vmatmul.f32.gmra.mxu0 %v835
  %v1076 = vpop.f32.mrf.mxu0
  %v1077 = vadd.f32 %v655, %v1076
  %1078 = vmatmul.f32.gmra.mxu0 %v838
  %v1079 = vpop.f32.mrf.mxu0
  %v1080 = vadd.f32 %v655, %v1079
  %1081 = vmatmul.f32.gmra.mxu0 %v841
  %v1082 = vpop.f32.mrf.mxu0
  %v1083 = vadd.f32 %v655, %v1082
  %1084 = vmatmul.f32.gmra.mxu0 %v844
  %v1085 = vpop.f32.mrf.mxu0
  %v1086 = vadd.f32 %v655, %v1085
  %1087 = vmatmul.f32.gmra.mxu0 %v847
  %v1088 = vpop.f32.mrf.mxu0
  %v1089 = vadd.f32 %v655, %v1088
  %1090 = vmatmul.f32.gmra.mxu0 %v850
  %v1091 = vpop.f32.mrf.mxu0
  %v1092 = vadd.f32 %v655, %v1091
  %1093 = vmatmul.f32.gmra.mxu0 %v853
  %v1094 = vpop.f32.mrf.mxu0
  %v1095 = vadd.f32 %v655, %v1094
  %1096 = vmatmul.f32.gmra.mxu0 %v856
  %v1097 = vpop.f32.mrf.mxu0
  %v1098 = vadd.f32 %v655, %v1097
  %1099 = vmatmul.f32.gmra.mxu0 %v859
  %v1100 = vpop.f32.mrf.mxu0
  %v1101 = vadd.f32 %v655, %v1100
  %1102 = vmatmul.f32.gmra.mxu0 %v862
  %v1103 = vpop.f32.mrf.mxu0
  %v1104 = vadd.f32 %v655, %v1103
  %1105 = vmatmul.f32.gmra.mxu0 %v865
  %v1106 = vpop.f32.mrf.mxu0
  %v1107 = vadd.f32 %v655, %v1106
  %1108 = vmatmul.f32.gmra.mxu0 %v868
  %v1109 = vpop.f32.mrf.mxu0
  %v1110 = vadd.f32 %v655, %v1109
  %1111 = vmatmul.f32.gmra.mxu0 %v871
  %v1112 = vpop.f32.mrf.mxu0
  %v1113 = vadd.f32 %v655, %v1112
  %1114 = vmatmul.f32.gmra.mxu0 %v874
  %v1115 = vpop.f32.mrf.mxu0
  %v1116 = vadd.f32 %v655, %v1115
  %1117 = vmatmul.f32.gmra.mxu0 %v877
  %v1118 = vpop.f32.mrf.mxu0
  %v1119 = vadd.f32 %v655, %v1118
  %1120 = vmatmul.f32.gmra.mxu0 %v880
  %v1121 = vpop.f32.mrf.mxu0
  %v1122 = vadd.f32 %v655, %v1121
  %1123 = vdwg.mxu0
  %v1124 = vmax.f32 %v900, 0.0
  %v1125 = vmax.f32 %v903, 0.0
  %v1126 = vmax.f32 %v906, 0.0
  %v1127 = vmax.f32 %v909, 0.0
  %v1128 = vmax.f32 %v912, 0.0
  %v1129 = vmax.f32 %v915, 0.0
  %v1130 = vmax.f32 %v918, 0.0
  %v1131 = vmax.f32 %v921, 0.0
  %v1132 = vmax.f32 %v924, 0.0
  %v1133 = vmax.f32 %v927, 0.0
  %v1134 = vmax.f32 %v930, 0.0
  %v1135 = vmax.f32 %v933, 0.0
  %v1136 = vmax.f32 %v936, 0.0
  %v1137 = vmax.f32 %v939, 0.0
  %v1138 = vmax.f32 %v942, 0.0
  %v1139 = vmax.f32 %v945, 0.0
  %v1140 = vmax.f32 %v948, 0.0
  %v1141 = vmax.f32 %v951, 0.0
  %v1142 = vmax.f32 %v954, 0.0
  %v1143 = vmax.f32 %v957, 0.0
  %v1144 = vmax.f32 %v960, 0.0
  %v1145 = vmax.f32 %v963, 0.0
  %v1146 = vmax.f32 %v966, 0.0
  %v1147 = vmax.f32 %v969, 0.0
  %v1148 = vmax.f32 %v972, 0.0
  %v1149 = vmax.f32 %v975, 0.0
  %v1150 = vmax.f32 %v978, 0.0
  %v1151 = vmax.f32 %v981, 0.0
  %v1152 = vmax.f32 %v984, 0.0
  %v1153 = vmax.f32 %v987, 0.0
  %v1154 = vmax.f32 %v990, 0.0
  %v1155 = vmax.f32 %v993, 0.0
  %v1156 = vmax.f32 %v996, 0.0
  %v1157 = vmax.f32 %v999, 0.0
  %v1158 = vmax.f32 %v1002, 0.0
  %v1159 = vmax.f32 %v1005, 0.0
  %v1160 = vmax.f32 %v1008, 0.0
  %v1161 = vmax.f32 %v1011, 0.0
  %v1162 = vmax.f32 %v1014, 0.0
  %v1163 = vmax.f32 %v1017, 0.0
  %v1164 = vmax.f32 %v1020, 0.0
  %v1165 = vmax.f32 %v1023, 0.0
  %v1166 = vmax.f32 %v1026, 0.0
  %v1167 = vmax.f32 %v1029, 0.0
  %v1168 = vmax.f32 %v1032, 0.0
  %v1169 = vmax.f32 %v1035, 0.0
  %v1170 = vmax.f32 %v1038, 0.0
  %v1171 = vmax.f32 %v1041, 0.0
  %v1172 = vmax.f32 %v1044, 0.0
  %v1173 = vmax.f32 %v1047, 0.0
  %v1174 = vmax.f32 %v1050, 0.0
  %v1175 = vmax.f32 %v1053, 0.0
  %v1176 = vmax.f32 %v1056, 0.0
  %v1177 = vmax.f32 %v1059, 0.0
  %v1178 = vmax.f32 %v1062, 0.0
  %v1179 = vmax.f32 %v1065, 0.0
  %v1180 = vmax.f32 %v1068, 0.0
  %v1181 = vmax.f32 %v1071, 0.0
  %v1182 = vmax.f32 %v1074, 0.0
  %v1183 = vmax.f32 %v1077, 0.0
  %v1184 = vmax.f32 %v1080, 0.0
  %v1185 = vmax.f32 %v1083, 0.0
  %v1186 = vmax.f32 %v1086, 0.0
  %v1187 = vmax.f32 %v1089, 0.0
  %v1188 = vmax.f32 %v1092, 0.0
  %v1189 = vmax.f32 %v1095, 0.0
  %v1190 = vmax.f32 %v1098, 0.0
  %v1191 = vmax.f32 %v1101, 0.0
  %v1192 = vmax.f32 %v1104, 0.0
  %v1193 = vmax.f32 %v1107, 0.0
  %v1194 = vmax.f32 %v1110, 0.0
  %v1195 = vmax.f32 %v1113, 0.0
  %v1196 = vmax.f32 %v1116, 0.0
  %v1197 = vmax.f32 %v1119, 0.0
  %v1198 = vmax.f32 %v1122, 0.0
  %v1199 = vld [vmem:[%s4 + $0x1] sm:$0x1]
  %v1200 = vperm.slane %v1199, 0
  %v1201 = vmul.f32 %v1124, %v1200
  %v1202 = vmul.f32 %v1125, %v1200
  %v1203 = vmul.f32 %v1126, %v1200
  %v1204 = vmul.f32 %v1127, %v1200
  %v1205 = vmul.f32 %v1128, %v1200
  %v1206 = vmul.f32 %v1129, %v1200
  %v1207 = vmul.f32 %v1130, %v1200
  %v1208 = vmul.f32 %v1131, %v1200
  %v1209 = vmul.f32 %v1132, %v1200
  %v1210 = vmul.f32 %v1133, %v1200
  %v1211 = vmul.f32 %v1134, %v1200
  %v1212 = vmul.f32 %v1135, %v1200
  %v1213 = vmul.f32 %v1136, %v1200
  %v1214 = vmul.f32 %v1137, %v1200
  %v1215 = vmul.f32 %v1138, %v1200
  %v1216 = vmul.f32 %v1139, %v1200
  %v1217 = vmul.f32 %v1140, %v1200
  %v1218 = vmul.f32 %v1141, %v1200
  %v1219 = vmul.f32 %v1142, %v1200
  %v1220 = vmul.f32 %v1143, %v1200
  %v1221 = vmul.f32 %v1144, %v1200
  %v1222 = vmul.f32 %v1145, %v1200
  %v1223 = vmul.f32 %v1146, %v1200
  %v1224 = vmul.f32 %v1147, %v1200
  %v1225 = vmul.f32 %v1148, %v1200
  %v1226 = vmul.f32 %v1149, %v1200
  %v1227 = vmul.f32 %v1150, %v1200
  %v1228 = vmul.f32 %v1151, %v1200
  %v1229 = vmul.f32 %v1152, %v1200
  %v1230 = vmul.f32 %v1153, %v1200
  %v1231 = vmul.f32 %v1154, %v1200
  %v1232 = vmul.f32 %v1155, %v1200
  %v1233 = vmul.f32 %v1156, %v1200
  %v1234 = vmul.f32 %v1157, %v1200
  %v1235 = vmul.f32 %v1158, %v1200
  %v1236 = vmul.f32 %v1159, %v1200
  %v1237 = vmul.f32 %v1160, %v1200
  %v1238 = vmul.f32 %v1161, %v1200
  %v1239 = vmul.f32 %v1162, %v1200
  %v1240 = vmul.f32 %v1163, %v1200
  %v1241 = vmul.f32 %v1164, %v1200
  %v1242 = vmul.f32 %v1165, %v1200
  %v1243 = vmul.f32 %v1166, %v1200
  %v1244 = vmul.f32 %v1167, %v1200
  %v1245 = vmul.f32 %v1168, %v1200
  %v1246 = vmul.f32 %v1169, %v1200
  %v1247 = vmul.f32 %v1170, %v1200
  %v1248 = vmul.f32 %v1171, %v1200
  %v1249 = vmul.f32 %v1172, %v1200
  %v1250 = vmul.f32 %v1173, %v1200
  %v1251 = vmul.f32 %v1174, %v1200
  %v1252 = vmul.f32 %v1175, %v1200
  %v1253 = vmul.f32 %v1176, %v1200
  %v1254 = vmul.f32 %v1177, %v1200
  %v1255 = vmul.f32 %v1178, %v1200
  %v1256 = vmul.f32 %v1179, %v1200
  %v1257 = vmul.f32 %v1180, %v1200
  %v1258 = vmul.f32 %v1181, %v1200
  %v1259 = vmul.f32 %v1182, %v1200
  %v1260 = vmul.f32 %v1183, %v1200
  %v1261 = vmul.f32 %v1184, %v1200
  %v1262 = vmul.f32 %v1185, %v1200
  %v1263 = vmul.f32 %v1186, %v1200
  %v1264 = vmul.f32 %v1187, %v1200
  %v1265 = vmul.f32 %v1188, %v1200
  %v1266 = vmul.f32 %v1189, %v1200
  %v1267 = vmul.f32 %v1190, %v1200
  %v1268 = vmul.f32 %v1191, %v1200
  %v1269 = vmul.f32 %v1192, %v1200
  %v1270 = vmul.f32 %v1193, %v1200
  %v1271 = vmul.f32 %v1194, %v1200
  %v1272 = vmul.f32 %v1195, %v1200
  %v1273 = vmul.f32 %v1196, %v1200
  %v1274 = vmul.f32 %v1197, %v1200
  %v1275 = vmul.f32 %v1198, %v1200
  %v1276 = vld [vmem:[%s4 + $0x2] sm:$0x1]
  %v1277 = vperm.slane %v1276, 0
  %v1278 = vadd.f32 %v1201, %v1277
  %v1279 = vadd.f32 %v1202, %v1277
  %v1280 = vadd.f32 %v1203, %v1277
  %v1281 = vadd.f32 %v1204, %v1277
  %v1282 = vadd.f32 %v1205, %v1277
  %v1283 = vadd.f32 %v1206, %v1277
  %v1284 = vadd.f32 %v1207, %v1277
  %v1285 = vadd.f32 %v1208, %v1277
  %v1286 = vadd.f32 %v1209, %v1277
  %v1287 = vadd.f32 %v1210, %v1277
  %v1288 = vadd.f32 %v1211, %v1277
  %v1289 = vadd.f32 %v1212, %v1277
  %v1290 = vadd.f32 %v1213, %v1277
  %v1291 = vadd.f32 %v1214, %v1277
  %v1292 = vadd.f32 %v1215, %v1277
  %v1293 = vadd.f32 %v1216, %v1277
  %v1294 = vadd.f32 %v1217, %v1277
  %v1295 = vadd.f32 %v1218, %v1277
  %v1296 = vadd.f32 %v1219, %v1277
  %v1297 = vadd.f32 %v1220, %v1277
  %v1298 = vadd.f32 %v1221, %v1277
  %v1299 = vadd.f32 %v1222, %v1277
  %v1300 = vadd.f32 %v1223, %v1277
  %v1301 = vadd.f32 %v1224, %v1277
  %v1302 = vadd.f32 %v1225, %v1277
  %v1303 = vadd.f32 %v1226, %v1277
  %v1304 = vadd.f32 %v1227, %v1277
  %v1305 = vadd.f32 %v1228, %v1277
  %v1306 = vadd.f32 %v1229, %v1277
  %v1307 = vadd.f32 %v1230, %v1277
  %v1308 = vadd.f32 %v1231, %v1277
  %v1309 = vadd.f32 %v1232, %v1277
  %v1310 = vadd.f32 %v1233, %v1277
  %v1311 = vadd.f32 %v1234, %v1277
  %v1312 = vadd.f32 %v1235, %v1277
  %v1313 = vadd.f32 %v1236, %v1277
  %v1314 = vadd.f32 %v1237, %v1277
  %v1315 = vadd.f32 %v1238, %v1277
  %v1316 = vadd.f32 %v1239, %v1277
  %v1317 = vadd.f32 %v1240, %v1277
  %v1318 = vadd.f32 %v1241, %v1277
  %v1319 = vadd.f32 %v1242, %v1277
  %v1320 = vadd.f32 %v1243, %v1277
  %v1321 = vadd.f32 %v1244, %v1277
  %v1322 = vadd.f32 %v1245, %v1277
  %v1323 = vadd.f32 %v1246, %v1277
  %v1324 = vadd.f32 %v1247, %v1277
  %v1325 = vadd.f32 %v1248, %v1277
  %v1326 = vadd.f32 %v1249, %v1277
  %v1327 = vadd.f32 %v1250, %v1277
  %v1328 = vadd.f32 %v1251, %v1277
  %v1329 = vadd.f32 %v1252, %v1277
  %v1330 = vadd.f32 %v1253, %v1277
  %v1331 = vadd.f32 %v1254, %v1277
  %v1332 = vadd.f32 %v1255, %v1277
  %v1333 = vadd.f32 %v1256, %v1277
  %v1334 = vadd.f32 %v1257, %v1277
  %v1335 = vadd.f32 %v1258, %v1277
  %v1336 = vadd.f32 %v1259, %v1277
  %v1337 = vadd.f32 %v1260, %v1277
  %v1338 = vadd.f32 %v1261, %v1277
  %v1339 = vadd.f32 %v1262, %v1277
  %v1340 = vadd.f32 %v1263, %v1277
  %v1341 = vadd.f32 %v1264, %v1277
  %v1342 = vadd.f32 %v1265, %v1277
  %v1343 = vadd.f32 %v1266, %v1277
  %v1344 = vadd.f32 %v1267, %v1277
  %v1345 = vadd.f32 %v1268, %v1277
  %v1346 = vadd.f32 %v1269, %v1277
  %v1347 = vadd.f32 %v1270, %v1277
  %v1348 = vadd.f32 %v1271, %v1277
  %v1349 = vadd.f32 %v1272, %v1277
  %v1350 = vadd.f32 %v1273, %v1277
  %v1351 = vadd.f32 %v1274, %v1277
  %v1352 = vadd.f32 %v1275, %v1277
  %vm1353 = vcmask 130048
  %1354 = vst.msk [vmem:[%s5] sm:$0xff] %vm1353, %v1278
  %1355 = vst.msk [vmem:[%s5 + $0x8] sm:$0xff] %vm1353, %v1279
  %1356 = vst.msk [vmem:[%s5 + $0x10] sm:$0xff] %vm1353, %v1280
  %1357 = vst.msk [vmem:[%s5 + $0x18] sm:$0xff] %vm1353, %v1281
  %1358 = vst.msk [vmem:[%s5 + $0x20] sm:$0xff] %vm1353, %v1282
  %1359 = vst.msk [vmem:[%s5 + $0x28] sm:$0xff] %vm1353, %v1283
  %1360 = vst.msk [vmem:[%s5 + $0x30] sm:$0xff] %vm1353, %v1284
  %1361 = vst.msk [vmem:[%s5 + $0x38] sm:$0xff] %vm1353, %v1285
  %1362 = vst.msk [vmem:[%s5 + $0x40] sm:$0xff] %vm1353, %v1286
  %1363 = vst.msk [vmem:[%s5 + $0x48] sm:$0xff] %vm1353, %v1287
  %1364 = vst.msk [vmem:[%s5 + $0x50] sm:$0xff] %vm1353, %v1288
  %1365 = vst.msk [vmem:[%s5 + $0x58] sm:$0xff] %vm1353, %v1289
  %1366 = vst.msk [vmem:[%s5 + $0x60] sm:$0xff] %vm1353, %v1290
  %1367 = vst.msk [vmem:[%s5 + $0x68] sm:$0xff] %vm1353, %v1291
  %1368 = vst.msk [vmem:[%s5 + $0x70] sm:$0xff] %vm1353, %v1292
  %1369 = vst.msk [vmem:[%s5 + $0x78] sm:$0xff] %vm1353, %v1293
  %1370 = vst.msk [vmem:[%s5 + $0x80] sm:$0xff] %vm1353, %v1294
  %1371 = vst.msk [vmem:[%s5 + $0x88] sm:$0xff] %vm1353, %v1295
  %1372 = vst.msk [vmem:[%s5 + $0x90] sm:$0xff] %vm1353, %v1296
  %1373 = vst.msk [vmem:[%s5 + $0x98] sm:$0xff] %vm1353, %v1297
  %1374 = vst.msk [vmem:[%s5 + $0xa0] sm:$0xff] %vm1353, %v1298
  %1375 = vst.msk [vmem:[%s5 + $0xa8] sm:$0xff] %vm1353, %v1299
  %1376 = vst.msk [vmem:[%s5 + $0xb0] sm:$0xff] %vm1353, %v1300
  %1377 = vst.msk [vmem:[%s5 + $0xb8] sm:$0xff] %vm1353, %v1301
  %1378 = vst.msk [vmem:[%s5 + $0xc0] sm:$0xff] %vm1353, %v1302
  %1379 = vst.msk [vmem:[%s5 + $0xc8] sm:$0xff] %vm1353, %v1303
  %1380 = vst.msk [vmem:[%s5 + $0xd0] sm:$0xff] %vm1353, %v1304
  %1381 = vst.msk [vmem:[%s5 + $0xd8] sm:$0xff] %vm1353, %v1305
  %1382 = vst.msk [vmem:[%s5 + $0xe0] sm:$0xff] %vm1353, %v1306
  %1383 = vst.msk [vmem:[%s5 + $0xe8] sm:$0xff] %vm1353, %v1307
  %1384 = vst.msk [vmem:[%s5 + $0xf0] sm:$0xff] %vm1353, %v1308
  %1385 = vst.msk [vmem:[%s5 + $0xf8] sm:$0xff] %vm1353, %v1309
  %1386 = vst.msk [vmem:[%s5 + $0x100] sm:$0xff] %vm1353, %v1310
  %1387 = vst.msk [vmem:[%s5 + $0x108] sm:$0xff] %vm1353, %v1311
  %1388 = vst.msk [vmem:[%s5 + $0x110] sm:$0xff] %vm1353, %v1312
  %1389 = vst.msk [vmem:[%s5 + $0x118] sm:$0xff] %vm1353, %v1313
  %1390 = vst.msk [vmem:[%s5 + $0x120] sm:$0xff] %vm1353, %v1314
  %1391 = vst.msk [vmem:[%s5 + $0x128] sm:$0xff] %vm1353, %v1315
  %1392 = vst.msk [vmem:[%s5 + $0x130] sm:$0xff] %vm1353, %v1316
  %1393 = vst.msk [vmem:[%s5 + $0x138] sm:$0xff] %vm1353, %v1317
  %1394 = vst.msk [vmem:[%s5 + $0x140] sm:$0xff] %vm1353, %v1318
  %1395 = vst.msk [vmem:[%s5 + $0x148] sm:$0xff] %vm1353, %v1319
  %1396 = vst.msk [vmem:[%s5 + $0x150] sm:$0xff] %vm1353, %v1320
  %1397 = vst.msk [vmem:[%s5 + $0x158] sm:$0xff] %vm1353, %v1321
  %1398 = vst.msk [vmem:[%s5 + $0x160] sm:$0xff] %vm1353, %v1322
  %1399 = vst.msk [vmem:[%s5 + $0x168] sm:$0xff] %vm1353, %v1323
  %1400 = vst.msk [vmem:[%s5 + $0x170] sm:$0xff] %vm1353, %v1324
  %1401 = vst.msk [vmem:[%s5 + $0x178] sm:$0xff] %vm1353, %v1325
  %1402 = vst.msk [vmem:[%s5 + $0x180] sm:$0xff] %vm1353, %v1326
  %1403 = vst.msk [vmem:[%s5 + $0x188] sm:$0xff] %vm1353, %v1327
  %1404 = vst.msk [vmem:[%s5 + $0x190] sm:$0xff] %vm1353, %v1328
  %1405 = vst.msk [vmem:[%s5 + $0x198] sm:$0xff] %vm1353, %v1329
  %1406 = vst.msk [vmem:[%s5 + $0x1a0] sm:$0xff] %vm1353, %v1330
  %1407 = vst.msk [vmem:[%s5 + $0x1a8] sm:$0xff] %vm1353, %v1331
  %1408 = vst.msk [vmem:[%s5 + $0x1b0] sm:$0xff] %vm1353, %v1332
  %1409 = vst.msk [vmem:[%s5 + $0x1b8] sm:$0xff] %vm1353, %v1333
  %1410 = vst.msk [vmem:[%s5 + $0x1c0] sm:$0xff] %vm1353, %v1334
  %1411 = vst.msk [vmem:[%s5 + $0x1c8] sm:$0xff] %vm1353, %v1335
  %1412 = vst.msk [vmem:[%s5 + $0x1d0] sm:$0xff] %vm1353, %v1336
  %1413 = vst.msk [vmem:[%s5 + $0x1d8] sm:$0xff] %vm1353, %v1337
  %1414 = vst.msk [vmem:[%s5 + $0x1e0] sm:$0xff] %vm1353, %v1338
  %1415 = vst.msk [vmem:[%s5 + $0x1e8] sm:$0xff] %vm1353, %v1339
  %1416 = vst.msk [vmem:[%s5 + $0x1f0] sm:$0xff] %vm1353, %v1340
  %1417 = vst.msk [vmem:[%s5 + $0x1f8] sm:$0xff] %vm1353, %v1341
  %1418 = vst.msk [vmem:[%s5 + $0x200] sm:$0xff] %vm1353, %v1342
  %1419 = vst.msk [vmem:[%s5 + $0x208] sm:$0xff] %vm1353, %v1343
  %1420 = vst.msk [vmem:[%s5 + $0x210] sm:$0xff] %vm1353, %v1344
  %1421 = vst.msk [vmem:[%s5 + $0x218] sm:$0xff] %vm1353, %v1345
  %1422 = vst.msk [vmem:[%s5 + $0x220] sm:$0xff] %vm1353, %v1346
  %1423 = vst.msk [vmem:[%s5 + $0x228] sm:$0xff] %vm1353, %v1347
  %1424 = vst.msk [vmem:[%s5 + $0x230] sm:$0xff] %vm1353, %v1348
  %1425 = vst.msk [vmem:[%s5 + $0x238] sm:$0xff] %vm1353, %v1349
  %1426 = vst.msk [vmem:[%s5 + $0x240] sm:$0xff] %vm1353, %v1350
  %1427 = vst.msk [vmem:[%s5 + $0x248] sm:$0xff] %vm1353, %v1351
  %1428 = vst.msk [vmem:[%s5 + $0x250] sm:$0xff] %vm1353, %v1352
  // Predicated region
  $region22: #{tpu_custom_call.1} parent=0 // pred_check
    _
  $region23: #{tpu_custom_call.1} parent=0 // pred_check_branch
    %1430 = sbr.rel (0) target = $region25
  $region24: #{tpu_custom_call.1} parent=0 // pred_region
    _
  $region25: #{tpu_custom_call.1} parent=0 // pred_fallthru
    _
  // Predicated region
  $region26: #{tpu_custom_call.1} parent=0 // pred_check
    _
  $region27: #{tpu_custom_call.1} parent=0 // pred_check_branch
    %1432 = sbr.rel (0) target = $region29
  $region28: #{tpu_custom_call.1} parent=0 // pred_region
    _
  $region29: #{tpu_custom_call.1} parent=0 // pred_fallthru
    _

</llo_original>
